<compile_context>
chip_gen: v5e
topology: v5e:2x2
jax: 0.10.0
libtpu: 0.0.40
codegen_flags: <defaults>
</compile_context>

<pallas_src>
import functools

import jax
import jax.numpy as jnp
from jax.experimental import pallas as pl
from jax.experimental.pallas import tpu as pltpu


BN_EPS = 1e-5


def _elu(x):
    # ELU(alpha=1.0): x if x > 0 else exp(x) - 1.
    # (exp lands in the EUP slot; kept as exp-1 for Mosaic lowering portability.)
    return jnp.where(x > 0, x, jnp.exp(x) - 1.0)


def _round_up(n, m):
    return ((n + m - 1) // m) * m


def _pad2d(a, rows, cols):
    if a.shape == (rows, cols):
        return a
    return jnp.pad(a, ((0, rows - a.shape[0]), (0, cols - a.shape[1])))


def _fold_bn(w, b, gamma, beta, mean, var):
    """Fold eval-mode BatchNorm1d into the preceding Linear: y = x @ w' + b'."""
    scale = gamma * jax.lax.rsqrt(var + BN_EPS)          # (1, H)
    w_f = w * scale                                       # (D, H) * (1, H)
    b_f = (b - mean) * scale + beta                       # (1, H)
    return w_f, b_f


def mlp_head_kernel(x_ref, w1_ref, b1_ref, w2_ref, b2_ref, w3_ref, b3_ref, o_ref):
    # Activation tile arrives in its HBM dtype (f32); cast to the weight
    # (compute) dtype here so the wrapper never materializes a cast copy.
    x = x_ref[...].astype(w1_ref.dtype)                               # (TB, Dp)

    # ---- Linear1 (BN folded) + ELU (+ Dropout = identity) ----
    h = jnp.dot(x, w1_ref[...], preferred_element_type=jnp.float32)   # f32 acc
    h = _elu(h + b1_ref[...])                                         # f32 VPU/EUP

    # ---- Linear2 (BN folded) + ELU (+ Dropout = identity) ----
    h = jnp.dot(h.astype(w2_ref.dtype), w2_ref[...],
                preferred_element_type=jnp.float32)
    h = _elu(h + b2_ref[...])

    # ---- Linear3 ----
    out = jnp.dot(h.astype(w3_ref.dtype), w3_ref[...],
                  preferred_element_type=jnp.float32)
    o_ref[...] = (out + b3_ref[...]).astype(o_ref.dtype)


@functools.partial(jax.jit, static_argnames=("compute_dtype", "batch_tile"))
def mlp_head(x, params, *, compute_dtype=jnp.bfloat16, batch_tile=512):
    """x: (B, embed_dim) float32 backbone features. params: dict of head weights."""
    B, D = x.shape
    H = params["w1"].shape[1]
    C = params["w3"].shape[1]

    # Fold BN layers into the linear weights/biases (fused by XLA under jit).
    w1, b1 = _fold_bn(params["w1"], params["b1"], params["g1"], params["be1"],
                      params["m1"], params["v1"])
    w2, b2 = _fold_bn(params["w2"], params["b2"], params["g2"], params["be2"],
                      params["m2"], params["v2"])
    w3, b3 = params["w3"], params["b3"]

    # Lane-dense padding: features -> multiples of 128, batch -> multiple of the tile.
    Dp = _round_up(D, 128)
    Hp = _round_up(H, 128)
    Cp = _round_up(C, 128)
    TB = min(_round_up(batch_tile, 8), _round_up(B, 8))   # sublane-aligned batch tile
    Bp = _round_up(B, TB)

    # Activations stay f32 in HBM; pad only if actually needed (no extra HBM
    # round trip for the common aligned case). Cast to bf16 happens in-kernel.
    xp = x if (Bp == B and Dp == D) else _pad2d(x, Bp, Dp)

    w1p = _pad2d(w1, Dp, Hp).astype(compute_dtype)
    w2p = _pad2d(w2, Hp, Hp).astype(compute_dtype)
    w3p = _pad2d(w3, Hp, Cp).astype(compute_dtype)
    # Biases stay f32: elementwise math is done in f32 inside the kernel.
    # (Zero-padded lanes must remain exactly 0 so ELU(0)=0 stays inert.)
    b1p = _pad2d(b1, 1, Hp).astype(jnp.float32)
    b2p = _pad2d(b2, 1, Hp).astype(jnp.float32)
    b3p = _pad2d(b3, 1, Cp).astype(jnp.float32)

    grid = (Bp // TB,)

    # Resident operands: constant index_map -> single-buffer them (no point in
    # double-buffering a tile that never changes).
    resident = pl.Buffered(1)

    # VMEM budget: single-buffered weights + double-buffered x/out tiles +
    # headroom for intermediates; clamp into a sane range.
    w_itemsize = jnp.dtype(compute_dtype).itemsize
    w_bytes = (Dp * Hp + Hp * Hp + Hp * Cp) * w_itemsize
    b_bytes = (2 * Hp + Cp) * 4
    x_bytes = 2 * TB * Dp * 4
    o_bytes = 2 * TB * Cp * 4
    act_bytes = 4 * TB * Hp * 4
    budget = int((w_bytes + b_bytes + x_bytes + o_bytes + act_bytes) * 1.5) + (4 << 20)
    vmem_limit = int(min(max(budget, 16 << 20), 128 << 20))

    flops = 2 * Bp * (Dp * Hp + Hp * Hp + Hp * Cp)
    transcendentals = 2 * Bp * Hp  # two ELU layers
    bytes_accessed = (Bp * Dp * 4 + w_bytes + b_bytes + Bp * Cp * 4)

    out = pl.pallas_call(
        mlp_head_kernel,
        out_shape=jax.ShapeDtypeStruct((Bp, Cp), jnp.float32),
        grid_spec=pltpu.PrefetchScalarGridSpec(
            num_scalar_prefetch=0,
            grid=grid,
            in_specs=[
                pl.BlockSpec((TB, Dp), lambda i: (i, 0)),        # x: tiled over batch
                pl.BlockSpec((Dp, Hp), lambda i: (0, 0), pipeline_mode=resident),  # w1
                pl.BlockSpec((1, Hp), lambda i: (0, 0), pipeline_mode=resident),   # b1
                pl.BlockSpec((Hp, Hp), lambda i: (0, 0), pipeline_mode=resident),  # w2
                pl.BlockSpec((1, Hp), lambda i: (0, 0), pipeline_mode=resident),   # b2
                pl.BlockSpec((Hp, Cp), lambda i: (0, 0), pipeline_mode=resident),  # w3
                pl.BlockSpec((1, Cp), lambda i: (0, 0), pipeline_mode=resident),   # b3
            ],
            out_specs=pl.BlockSpec((TB, Cp), lambda i: (i, 0)),
        ),
        compiler_params=pltpu.CompilerParams(
            dimension_semantics=("parallel",),   # shard batch tiles across TCs
            vmem_limit_bytes=vmem_limit,
        ),
        cost_estimate=pl.CostEstimate(
            flops=flops,
            transcendentals=transcendentals,
            bytes_accessed=bytes_accessed,
        ),
    )(xp, w1p, b1p, w2p, b2p, w3p, b3p)

    return out[:B, :C]


def init_params(key, embed_dim, class_num):
    hidden = embed_dim // 2
    ks = jax.random.split(key, 6)

    def lin(k, fan_in, fan_out):
        bound = 1.0 / jnp.sqrt(fan_in)
        kw, kb = jax.random.split(k)
        w = jax.random.uniform(kw, (fan_in, fan_out), jnp.float32, -bound, bound)
        b = jax.random.uniform(kb, (1, fan_out), jnp.float32, -bound, bound)
        return w, b

    w1, b1 = lin(ks[0], embed_dim, hidden)
    w2, b2 = lin(ks[1], hidden, hidden)
    w3, b3 = lin(ks[2], hidden, class_num)

    # BatchNorm params (gamma=1, beta=0) with deterministic non-trivial running stats.
    m1 = 0.1 * jax.random.normal(ks[3], (1, hidden), jnp.float32)
    v1 = 1.0 + 0.1 * jax.random.uniform(ks[3], (1, hidden), jnp.float32)
    m2 = 0.1 * jax.random.normal(ks[4], (1, hidden), jnp.float32)
    v2 = 1.0 + 0.1 * jax.random.uniform(ks[4], (1, hidden), jnp.float32)

    return {
        "w1": w1, "b1": b1,
        "g1": jnp.ones((1, hidden), jnp.float32), "be1": jnp.zeros((1, hidden), jnp.float32),
        "m1": m1, "v1": v1,
        "w2": w2, "b2": b2,
        "g2": jnp.ones((1, hidden), jnp.float32), "be2": jnp.zeros((1, hidden), jnp.float32),
        "m2": m2, "v2": v2,
        "w3": w3, "b3": b3,
    }


def _bn_eval(x, gamma, beta, mean, var):
    inv = jax.lax.rsqrt(var + BN_EPS)
    return (x - mean) * inv * gamma + beta


def reference(x, p):
    h = x @ p["w1"] + p["b1"]
    h = _bn_eval(h, p["g1"], p["be1"], p["m1"], p["v1"])
    h = _elu(h)
    h = h @ p["w2"] + p["b2"]
    h = _bn_eval(h, p["g2"], p["be2"], p["m2"], p["v2"])
    h = _elu(h)
    return h @ p["w3"] + p["b3"]


if __name__ == "__main__":
    key = jax.random.PRNGKey(0)
    k_x, k_p = jax.random.split(key)

    B, EMBED_DIM, CLASS_NUM = 8, 32, 4  # hidden = 16
    # x stands in for backbone(x): (B, embed_dim) features.
    x = jax.random.normal(k_x, (B, EMBED_DIM), jnp.float32)
    params = init_params(k_p, EMBED_DIM, CLASS_NUM)

    ref = reference(x, params)

    # f32 compute path (tight tolerance vs reference).
    out_f32 = jax.block_until_ready(mlp_head(x, params, compute_dtype=jnp.float32))
    assert out_f32.shape == (B, CLASS_NUM)
    assert jnp.allclose(out_f32, ref, atol=1e-4, rtol=1e-4), "f32 mismatch vs JAX reference"

    # Default bf16 MXU path (f32 accumulation / elementwise), relaxed tolerance.
    out_bf16 = jax.block_until_ready(mlp_head(x, params))
    assert out_bf16.shape == (B, CLASS_NUM)
    assert jnp.allclose(out_bf16, ref, atol=5e-2, rtol=5e-2), "bf16 mismatch vs JAX reference"

    print("KERNEL_OK")
</pallas_src>

<mosaic_0001>
module attributes {stable_mosaic.version = 11 : i64} {
  func.func @mlp_head_kernel(%arg0: i32, %arg1: memref<8x128xf32, #tpu.memory_space<vmem>>, %arg2: memref<128x128xf32, #tpu.memory_space<vmem>>, %arg3: memref<1x128xf32, #tpu.memory_space<vmem>>, %arg4: memref<128x128xf32, #tpu.memory_space<vmem>>, %arg5: memref<1x128xf32, #tpu.memory_space<vmem>>, %arg6: memref<128x128xf32, #tpu.memory_space<vmem>>, %arg7: memref<1x128xf32, #tpu.memory_space<vmem>>, %arg8: memref<8x128xf32, #tpu.memory_space<vmem>>) attributes {dimension_semantics = [#tpu.dimension_semantics<parallel>], iteration_bounds = array<i64: 1>, scalar_prefetch = 0 : i64, scratch_operands = 0 : i64, tpu.core_type = #tpu.core_type<tc>, window_params = [{transform_indices = @transform_0, window_bounds = array<i64: 8, 128>}, {pipeline_mode = #tpu.pipeline_mode<synchronous>, transform_indices = @transform_1, window_bounds = array<i64: 128, 128>}, {pipeline_mode = #tpu.pipeline_mode<synchronous>, transform_indices = @transform_2, window_bounds = array<i64: 1, 128>}, {pipeline_mode = #tpu.pipeline_mode<synchronous>, transform_indices = @transform_3, window_bounds = array<i64: 128, 128>}, {pipeline_mode = #tpu.pipeline_mode<synchronous>, transform_indices = @transform_4, window_bounds = array<i64: 1, 128>}, {pipeline_mode = #tpu.pipeline_mode<synchronous>, transform_indices = @transform_5, window_bounds = array<i64: 128, 128>}, {pipeline_mode = #tpu.pipeline_mode<synchronous>, transform_indices = @transform_6, window_bounds = array<i64: 1, 128>}, {transform_indices = @transform_7, window_bounds = array<i64: 8, 128>}]} {
    %c0 = arith.constant 0 : index
    %c0_0 = arith.constant 0 : index
    %0 = vector.load %arg1[%c0, %c0_0] : memref<8x128xf32, #tpu.memory_space<vmem>>, vector<8x128xf32>
    %c0_1 = arith.constant 0 : index
    %c0_2 = arith.constant 0 : index
    %1 = vector.load %arg2[%c0_1, %c0_2] : memref<128x128xf32, #tpu.memory_space<vmem>>, vector<128x128xf32>
    %cst = arith.constant dense<0.000000e+00> : vector<8x128xf32>
    %2 = tpu.matmul %0, %1, %cst {dimension_numbers = #tpu.dot_dimension_numbers<[1], [0], [0], [1], [0, 0, 1, 1], [], []>} : vector<8x128xf32>, vector<128x128xf32>, vector<8x128xf32> -> vector<8x128xf32>
    %c0_3 = arith.constant 0 : index
    %c0_4 = arith.constant 0 : index
    %3 = vector.load %arg3[%c0_3, %c0_4] : memref<1x128xf32, #tpu.memory_space<vmem>>, vector<1x128xf32>
    %4 = vector.broadcast %3 : vector<1x128xf32> to vector<8x128xf32>
    %5 = arith.addf %2, %4 : vector<8x128xf32>
    %cst_5 = arith.constant 0.000000e+00 : f32
    %6 = vector.broadcast %cst_5 : f32 to vector<8x128xf32>
    %7 = arith.cmpf ogt, %5, %6 : vector<8x128xf32>
    %8 = math.exp %5 : vector<8x128xf32>
    %cst_6 = arith.constant 1.000000e+00 : f32
    %9 = vector.broadcast %cst_6 : f32 to vector<8x128xf32>
    %10 = arith.subf %8, %9 : vector<8x128xf32>
    %11 = arith.select %7, %5, %10 : vector<8x128xi1>, vector<8x128xf32>
    %c0_7 = arith.constant 0 : index
    %c0_8 = arith.constant 0 : index
    %12 = vector.load %arg4[%c0_7, %c0_8] : memref<128x128xf32, #tpu.memory_space<vmem>>, vector<128x128xf32>
    %cst_9 = arith.constant dense<0.000000e+00> : vector<8x128xf32>
    %13 = tpu.matmul %11, %12, %cst_9 {dimension_numbers = #tpu.dot_dimension_numbers<[1], [0], [0], [1], [0, 0, 1, 1], [], []>} : vector<8x128xf32>, vector<128x128xf32>, vector<8x128xf32> -> vector<8x128xf32>
    %c0_10 = arith.constant 0 : index
    %c0_11 = arith.constant 0 : index
    %14 = vector.load %arg5[%c0_10, %c0_11] : memref<1x128xf32, #tpu.memory_space<vmem>>, vector<1x128xf32>
    %15 = vector.broadcast %14 : vector<1x128xf32> to vector<8x128xf32>
    %16 = arith.addf %13, %15 : vector<8x128xf32>
    %cst_12 = arith.constant 0.000000e+00 : f32
    %17 = vector.broadcast %cst_12 : f32 to vector<8x128xf32>
    %18 = arith.cmpf ogt, %16, %17 : vector<8x128xf32>
    %19 = math.exp %16 : vector<8x128xf32>
    %cst_13 = arith.constant 1.000000e+00 : f32
    %20 = vector.broadcast %cst_13 : f32 to vector<8x128xf32>
    %21 = arith.subf %19, %20 : vector<8x128xf32>
    %22 = arith.select %18, %16, %21 : vector<8x128xi1>, vector<8x128xf32>
    %c0_14 = arith.constant 0 : index
    %c0_15 = arith.constant 0 : index
    %23 = vector.load %arg6[%c0_14, %c0_15] : memref<128x128xf32, #tpu.memory_space<vmem>>, vector<128x128xf32>
    %cst_16 = arith.constant dense<0.000000e+00> : vector<8x128xf32>
    %24 = tpu.matmul %22, %23, %cst_16 {dimension_numbers = #tpu.dot_dimension_numbers<[1], [0], [0], [1], [0, 0, 1, 1], [], []>} : vector<8x128xf32>, vector<128x128xf32>, vector<8x128xf32> -> vector<8x128xf32>
    %c0_17 = arith.constant 0 : index
    %c0_18 = arith.constant 0 : index
    %25 = vector.load %arg7[%c0_17, %c0_18] : memref<1x128xf32, #tpu.memory_space<vmem>>, vector<1x128xf32>
    %26 = vector.broadcast %25 : vector<1x128xf32> to vector<8x128xf32>
    %27 = arith.addf %24, %26 : vector<8x128xf32>
    %c0_19 = arith.constant 0 : index
    %c0_20 = arith.constant 0 : index
    %28 = vector.load %arg8[%c0_19, %c0_20] : memref<8x128xf32, #tpu.memory_space<vmem>>, vector<8x128xf32>
    tpu.vector_store %arg8[%c0_19, %c0_20], %27 {strides = array<i32>} : memref<8x128xf32, #tpu.memory_space<vmem>>, vector<8x128xf32>,
    return
  }
  func.func @transform_0(%arg0: i32) -> (i32, i32) {
    %c0_i32 = arith.constant 0 : i32
    %c0_i32_0 = arith.constant 0 : i32
    return %arg0, %c0_i32 : i32, i32
  }
  func.func @transform_1(%arg0: i32) -> (i32, i32) {
    %c0_i32 = arith.constant 0 : i32
    %c0_i32_0 = arith.constant 0 : i32
    %c0_i32_1 = arith.constant 0 : i32
    return %c0_i32, %c0_i32_0 : i32, i32
  }
  func.func @transform_2(%arg0: i32) -> (i32, i32) {
    %c0_i32 = arith.constant 0 : i32
    %c0_i32_0 = arith.constant 0 : i32
    %c0_i32_1 = arith.constant 0 : i32
    return %c0_i32, %c0_i32_0 : i32, i32
  }
  func.func @transform_3(%arg0: i32) -> (i32, i32) {
    %c0_i32 = arith.constant 0 : i32
    %c0_i32_0 = arith.constant 0 : i32
    %c0_i32_1 = arith.constant 0 : i32
    return %c0_i32, %c0_i32_0 : i32, i32
  }
  func.func @transform_4(%arg0: i32) -> (i32, i32) {
    %c0_i32 = arith.constant 0 : i32
    %c0_i32_0 = arith.constant 0 : i32
    %c0_i32_1 = arith.constant 0 : i32
    return %c0_i32, %c0_i32_0 : i32, i32
  }
  func.func @transform_5(%arg0: i32) -> (i32, i32) {
    %c0_i32 = arith.constant 0 : i32
    %c0_i32_0 = arith.constant 0 : i32
    %c0_i32_1 = arith.constant 0 : i32
    return %c0_i32, %c0_i32_0 : i32, i32
  }
  func.func @transform_6(%arg0: i32) -> (i32, i32) {
    %c0_i32 = arith.constant 0 : i32
    %c0_i32_0 = arith.constant 0 : i32
    %c0_i32_1 = arith.constant 0 : i32
    return %c0_i32, %c0_i32_0 : i32, i32
  }
  func.func @transform_7(%arg0: i32) -> (i32, i32) {
    %c0_i32 = arith.constant 0 : i32
    %c0_i32_0 = arith.constant 0 : i32
    return %arg0, %c0_i32 : i32, i32
  }
}

</mosaic_0001>

<llo_original>
// kernel: mlp_head.1
$region0: #{mlp_head.1}
  #allocation0 [shape = 'u32[]', space=smem, size = 0x4, offset = 0x4, fixed_abs, tag = 'smem constant byte address 0x4 - core index']
  #allocation1 [shape = 'u32[72,128]{1,0:T(1,128)}', space=vmem, size = 0x9000, scoped, tag = 'internal scratch']
  %s0 = inlined_call_operand.vmem [shape: f32[8,128], index: 0, kind: input, shape index: {}]
  %s1 = inlined_call_operand.vmem [shape: f32[128,128], index: 1, kind: input, shape index: {}]
  %s2 = inlined_call_operand.vmem [shape: f32[1,128], index: 2, kind: input, shape index: {}]
  %s3 = inlined_call_operand.vmem [shape: f32[128,128], index: 3, kind: input, shape index: {}]
  %s4 = inlined_call_operand.vmem [shape: f32[1,128], index: 4, kind: input, shape index: {}]
  %s5 = inlined_call_operand.vmem [shape: f32[128,128], index: 5, kind: input, shape index: {}]
  %s6 = inlined_call_operand.vmem [shape: f32[1,128], index: 6, kind: input, shape index: {}]
  %s7 = inlined_call_operand.vmem [shape: f32[8,128], index: 7, kind: output, shape index: {}]
  %s8 = sld [smem:[#allocation0]]
  $region38: #{mlp_head.1} parent=0
    _
  %s10 = ssub.s32 1, %s8
  %s11 = scalar_select 0, %s10, %s8
  // Predicated region
  $region2: #{mlp_head.1} parent=0 // pred_check
    _
  $region3: #{mlp_head.1} parent=0 // pred_check_branch
    %13 = sbr.rel (0) target = $region5
  $region4: #{mlp_head.1} parent=0 // pred_region
    _
  $region5: #{mlp_head.1} parent=0 // pred_fallthru
    _
  // Predicated region
  $region6: #{mlp_head.1} parent=0 // pred_check
    _
  $region7: #{mlp_head.1} parent=0 // pred_check_branch
    %15 = sbr.rel (0) target = $region9
  $region8: #{mlp_head.1} parent=0 // pred_region
    _
  $region9: #{mlp_head.1} parent=0 // pred_fallthru
    _
  // Predicated region
  $region10: #{mlp_head.1} parent=0 // pred_check
    _
  $region11: #{mlp_head.1} parent=0 // pred_check_branch
    %17 = sbr.rel (0) target = $region13
  $region12: #{mlp_head.1} parent=0 // pred_region
    _
  $region13: #{mlp_head.1} parent=0 // pred_fallthru
    _
  // Predicated region
  $region14: #{mlp_head.1} parent=0 // pred_check
    _
  $region15: #{mlp_head.1} parent=0 // pred_check_branch
    %19 = sbr.rel (0) target = $region17
  $region16: #{mlp_head.1} parent=0 // pred_region
    _
  $region17: #{mlp_head.1} parent=0 // pred_fallthru
    _
  // Predicated region
  $region18: #{mlp_head.1} parent=0 // pred_check
    _
  $region19: #{mlp_head.1} parent=0 // pred_check_branch
    %21 = sbr.rel (0) target = $region21
  $region20: #{mlp_head.1} parent=0 // pred_region
    _
  $region21: #{mlp_head.1} parent=0 // pred_fallthru
    _
  // Predicated region
  $region22: #{mlp_head.1} parent=0 // pred_check
    _
  $region23: #{mlp_head.1} parent=0 // pred_check_branch
    %23 = sbr.rel (0) target = $region25
  $region24: #{mlp_head.1} parent=0 // pred_region
    _
  $region25: #{mlp_head.1} parent=0 // pred_fallthru
    _
  // Predicated region
  $region26: #{mlp_head.1} parent=0 // pred_check
    _
  $region27: #{mlp_head.1} parent=0 // pred_check_branch
    %25 = sbr.rel (0) target = $region29
  $region28: #{mlp_head.1} parent=0 // pred_region
    _
  $region29: #{mlp_head.1} parent=0 // pred_fallthru
    _
  %v26 = vld [vmem:[%s0] sm:$0xff]
  %v27 = vld [vmem:[%s1] sm:$0xff]
  %v28 = vld [vmem:[%s1 + $0x8] sm:$0xff]
  %v29 = vld [vmem:[%s1 + $0x10] sm:$0xff]
  %v30 = vld [vmem:[%s1 + $0x18] sm:$0xff]
  %v31 = vld [vmem:[%s1 + $0x20] sm:$0xff]
  %v32 = vld [vmem:[%s1 + $0x28] sm:$0xff]
  %v33 = vld [vmem:[%s1 + $0x30] sm:$0xff]
  %v34 = vld [vmem:[%s1 + $0x38] sm:$0xff]
  %v35 = vld [vmem:[%s1 + $0x40] sm:$0xff]
  %v36 = vld [vmem:[%s1 + $0x48] sm:$0xff]
  %v37 = vld [vmem:[%s1 + $0x50] sm:$0xff]
  %v38 = vld [vmem:[%s1 + $0x58] sm:$0xff]
  %v39 = vld [vmem:[%s1 + $0x60] sm:$0xff]
  %v40 = vld [vmem:[%s1 + $0x68] sm:$0xff]
  %v41 = vld [vmem:[%s1 + $0x70] sm:$0xff]
  %v42 = vld [vmem:[%s1 + $0x78] sm:$0xff]
  %v43 = vld [vmem:[%s2] sm:$0x1]
  %v45 = vperm.slane %v43, 0
  %47 = vmatpush.msra.mxu0 %v42
  %48 = vmatpush.msra.mxu0 %v41
  %49 = vmatpush.msra.mxu0 %v40
  %50 = vmatpush.msra.mxu0 %v39
  %51 = vmatpush.msra.mxu0 %v38
  %52 = vmatpush.msra.mxu0 %v37
  %53 = vmatpush.msra.mxu0 %v36
  %54 = vmatpush.msra.mxu0 %v35
  %55 = vmatpush.msra.mxu0 %v34
  %56 = vmatpush.msra.mxu0 %v33
  %57 = vmatpush.msra.mxu0 %v32
  %58 = vmatpush.msra.mxu0 %v31
  %59 = vmatpush.msra.mxu0 %v30
  %60 = vmatpush.msra.mxu0 %v29
  %61 = vmatpush.msra.mxu0 %v28
  %62 = vmatpush.msra.mxu0 %v27
  %63 = vmatmul.f32.gmra.mxu0 %v26
  %v64 = vpop.f32.mrf.mxu0
  %v65 = vadd.f32 %v45, %v64
  %66 = vdwg.mxu0
  %vm67 = vcmp.gt.f32.partialorder %v65, 0.0
  %v68 = vmul.f32 %v65, 1.442695
  %v69 = vpow.pop %v68
  %v70 = vsub.f32 %v69, 1.0
  %v71 = vsel %vm67, %v65, %v70
  %v72 = vld [vmem:[%s3] sm:$0xff]
  %v73 = vld [vmem:[%s3 + $0x8] sm:$0xff]
  %v74 = vld [vmem:[%s3 + $0x10] sm:$0xff]
  %v75 = vld [vmem:[%s3 + $0x18] sm:$0xff]
  %v76 = vld [vmem:[%s3 + $0x20] sm:$0xff]
  %v77 = vld [vmem:[%s3 + $0x28] sm:$0xff]
  %v78 = vld [vmem:[%s3 + $0x30] sm:$0xff]
  %v79 = vld [vmem:[%s3 + $0x38] sm:$0xff]
  %v80 = vld [vmem:[%s3 + $0x40] sm:$0xff]
  %v81 = vld [vmem:[%s3 + $0x48] sm:$0xff]
  %v82 = vld [vmem:[%s3 + $0x50] sm:$0xff]
  %v83 = vld [vmem:[%s3 + $0x58] sm:$0xff]
  %v84 = vld [vmem:[%s3 + $0x60] sm:$0xff]
  %v85 = vld [vmem:[%s3 + $0x68] sm:$0xff]
  %v86 = vld [vmem:[%s3 + $0x70] sm:$0xff]
  %v87 = vld [vmem:[%s3 + $0x78] sm:$0xff]
  %v88 = vld [vmem:[%s4] sm:$0x1]
  %v90 = vperm.slane %v88, 0
  %92 = vmatpush.msra.mxu0 %v87
  %93 = vmatpush.msra.mxu0 %v86
  %94 = vmatpush.msra.mxu0 %v85
  %95 = vmatpush.msra.mxu0 %v84
  %96 = vmatpush.msra.mxu0 %v83
  %97 = vmatpush.msra.mxu0 %v82
  %98 = vmatpush.msra.mxu0 %v81
  %99 = vmatpush.msra.mxu0 %v80
  %100 = vmatpush.msra.mxu0 %v79
  %101 = vmatpush.msra.mxu0 %v78
  %102 = vmatpush.msra.mxu0 %v77
  %103 = vmatpush.msra.mxu0 %v76
  %104 = vmatpush.msra.mxu0 %v75
  %105 = vmatpush.msra.mxu0 %v74
  %106 = vmatpush.msra.mxu0 %v73
  %107 = vmatpush.msra.mxu0 %v72
  %108 = vmatmul.f32.gmra.mxu0 %v71
  %v109 = vpop.f32.mrf.mxu0
  %v110 = vadd.f32 %v90, %v109
  %111 = vdwg.mxu0
  %vm112 = vcmp.gt.f32.partialorder %v110, 0.0
  %v113 = vmul.f32 %v110, 1.442695
  %v114 = vpow.pop %v113
  %v115 = vsub.f32 %v114, 1.0
  %v116 = vsel %vm112, %v110, %v115
  %v117 = vld [vmem:[%s5] sm:$0xff]
  %v118 = vld [vmem:[%s5 + $0x8] sm:$0xff]
  %v119 = vld [vmem:[%s5 + $0x10] sm:$0xff]
  %v120 = vld [vmem:[%s5 + $0x18] sm:$0xff]
  %v121 = vld [vmem:[%s5 + $0x20] sm:$0xff]
  %v122 = vld [vmem:[%s5 + $0x28] sm:$0xff]
  %v123 = vld [vmem:[%s5 + $0x30] sm:$0xff]
  %v124 = vld [vmem:[%s5 + $0x38] sm:$0xff]
  %v125 = vld [vmem:[%s5 + $0x40] sm:$0xff]
  %v126 = vld [vmem:[%s5 + $0x48] sm:$0xff]
  %v127 = vld [vmem:[%s5 + $0x50] sm:$0xff]
  %v128 = vld [vmem:[%s5 + $0x58] sm:$0xff]
  %v129 = vld [vmem:[%s5 + $0x60] sm:$0xff]
  %v130 = vld [vmem:[%s5 + $0x68] sm:$0xff]
  %v131 = vld [vmem:[%s5 + $0x70] sm:$0xff]
  %v132 = vld [vmem:[%s5 + $0x78] sm:$0xff]
  %v133 = vld [vmem:[%s6] sm:$0x1]
  %v135 = vperm.slane %v133, 0
  %137 = vmatpush.msra.mxu0 %v132
  %138 = vmatpush.msra.mxu0 %v131
  %139 = vmatpush.msra.mxu0 %v130
  %140 = vmatpush.msra.mxu0 %v129
  %141 = vmatpush.msra.mxu0 %v128
  %142 = vmatpush.msra.mxu0 %v127
  %143 = vmatpush.msra.mxu0 %v126
  %144 = vmatpush.msra.mxu0 %v125
  %145 = vmatpush.msra.mxu0 %v124
  %146 = vmatpush.msra.mxu0 %v123
  %147 = vmatpush.msra.mxu0 %v122
  %148 = vmatpush.msra.mxu0 %v121
  %149 = vmatpush.msra.mxu0 %v120
  %150 = vmatpush.msra.mxu0 %v119
  %151 = vmatpush.msra.mxu0 %v118
  %152 = vmatpush.msra.mxu0 %v117
  %153 = vmatmul.f32.gmra.mxu0 %v116
  %v154 = vpop.f32.mrf.mxu0
  %v155 = vadd.f32 %v135, %v154
  %156 = vdwg.mxu0
  %157 = vst [vmem:[%s7] sm:$0xff] %v155
  // Predicated region
  $region30: #{mlp_head.1} parent=0 // pred_check
    _
  $region31: #{mlp_head.1} parent=0 // pred_check_branch
    %159 = sbr.rel (0) target = $region33
  $region32: #{mlp_head.1} parent=0 // pred_region
    _
  $region33: #{mlp_head.1} parent=0 // pred_fallthru
    _
  // Predicated region
  $region34: #{mlp_head.1} parent=0 // pred_check
    _
  $region35: #{mlp_head.1} parent=0 // pred_check_branch
    %161 = sbr.rel (0) target = $region37
  $region36: #{mlp_head.1} parent=0 // pred_region
    _
  $region37: #{mlp_head.1} parent=0 // pred_fallthru
    _

</llo_original>
